<compile_context>
chip_gen: v7x
topology: tpu7x:2x2x1
jax: 0.10.0
libtpu: 0.0.40
codegen_flags: <defaults>
</compile_context>

<pallas_src>
import jax
import jax.numpy as jnp
from jax.experimental import pallas as pl
from jax.experimental.pallas import tpu as pltpu


# ----------------------------------------------------------------------------
# Pallas kernel: lane-dense streaming pass-through (the decoder-boundary path).
# ----------------------------------------------------------------------------
_LANES = 128            # vreg lane width: lane-dense last dim
_ROW_ALIGN = 32         # sublane multiple covering f32 (8) / bf16 (16) / int8 (32)
_MAX_BLOCK_ROWS = 512   # ~256 KiB per f32 block -> tiny, pipelined, v7x-safe


def _copy_kernel(x_ref, o_ref):
    o_ref[...] = x_ref[...]


def _round_up(x: int, m: int) -> int:
    return ((x + m - 1) // m) * m


def _pallas_copy_2d(x2d: jax.Array, block_rows: int) -> jax.Array:
    """Tiled, double-buffered identity copy of a [rows, 128] slab."""
    rows, cols = x2d.shape
    assert rows % block_rows == 0 and cols == _LANES
    block_bytes = block_rows * cols * x2d.dtype.itemsize
    # Bounded scoped-VMEM request: 2x double-buffered (in + out) blocks + slack.
    vmem_limit = int(min(32 * 1024 * 1024, max(16 * block_bytes, 2 * 1024 * 1024)))
    return pl.pallas_call(
        _copy_kernel,
        out_shape=jax.ShapeDtypeStruct((rows, cols), x2d.dtype),
        grid=(rows // block_rows,),
        in_specs=[pl.BlockSpec((block_rows, cols), lambda i: (i, 0))],
        out_specs=pl.BlockSpec((block_rows, cols), lambda i: (i, 0)),
        # Pure identity: write in place over the donated (flattened) input.
        input_output_aliases={0: 0},
        compiler_params=pltpu.CompilerParams(
            dimension_semantics=("parallel",),   # v7x: shard tiles across 2 TCs
            vmem_limit_bytes=vmem_limit,
        ),
    )(x2d)


def pallas_passthrough(x: jax.Array) -> jax.Array:
    """Pass any-rank tensor through the Pallas copy kernel.

    The tensor is flattened to a lane-dense [rows, 128] view (zero-padded to a
    multiple of 128 * block_rows elements), streamed through VMEM in tiled
    blocks, and reshaped back to its original shape/dtype.
    """
    orig_shape = x.shape
    total = int(x.size)
    flat = x.reshape(-1)

    rows = -(-total // _LANES)                               # ceil(total / 128)
    block_rows = min(_MAX_BLOCK_ROWS, _round_up(max(rows, 1), _ROW_ALIGN))
    padded_rows = _round_up(max(rows, 1), block_rows)
    pad = padded_rows * _LANES - total
    if pad:
        flat = jnp.pad(flat, (0, pad))

    y2d = _pallas_copy_2d(flat.reshape(padded_rows, _LANES), block_rows)
    return y2d.reshape(-1)[:total].reshape(orig_shape)


# ----------------------------------------------------------------------------
# BaseDecoder: faithful translation of the PyTorch dispatch semantics.
# ----------------------------------------------------------------------------
class BaseDecoder:
    """Base decoder class for text recognition (JAX/Pallas translation)."""

    def __init__(self):
        # No parameters in the base class (matches the PyTorch __init__).
        pass

    # TODO(synk): these three hooks are abstract in the reference module; the
    # base class defines no compute of its own.
    def forward_train(self, feat, out_enc, targets_dict, img_metas):
        raise NotImplementedError

    def forward_test(self, feat, out_enc, img_metas):
        raise NotImplementedError

    def forward_test_speed(self, feat, out_enc, img_metas):
        raise NotImplementedError

    def forward(self, feat, out_enc, targets_dict=None, img_metas=None,
                train_mode=True, test_speed=False):
        self.train_mode = train_mode
        if train_mode:
            return self.forward_train(feat, out_enc, targets_dict, img_metas)
        if test_speed:
            return self.forward_test_speed(feat, out_enc, img_metas)
        return self.forward_test(feat, out_enc, img_metas)

    __call__ = forward


# Minimal concrete subclass so the dispatch can be exercised end-to-end.
# It routes out_enc (the encoder output a decoder head would consume) through
# the Pallas copy path; feat is accepted but unused, as in the base interface.
class IdentityDecoder(BaseDecoder):
    def forward_train(self, feat, out_enc, targets_dict, img_metas):
        return pallas_passthrough(out_enc)

    def forward_test(self, feat, out_enc, img_metas):
        return pallas_passthrough(out_enc)

    def forward_test_speed(self, feat, out_enc, img_metas):
        return pallas_passthrough(out_enc)


if __name__ == "__main__":
    key = jax.random.PRNGKey(0)
    k_feat, k_enc, k_odd = jax.random.split(key, 3)

    # Small shapes consistent with a text-recognition decoder interface:
    # feat: backbone feature map NCHW.  out_enc: encoder output [N, T, D].
    N, C, H, W = 2, 4, 16, 16
    T, D = 8, 32
    feat = jax.random.normal(k_feat, (N, C, H, W), dtype=jnp.float32)
    out_enc = jax.random.normal(k_enc, (N, T, D), dtype=jnp.float32)

    dec = IdentityDecoder()

    # Exercise all three dispatch branches (exact base-class semantics).
    y_train = dec(feat, out_enc, targets_dict={}, img_metas=None,
                  train_mode=True)
    y_test = dec(feat, out_enc, targets_dict=None, img_metas=None,
                 train_mode=False, test_speed=False)
    y_speed = dec(feat, out_enc, targets_dict=None, img_metas=None,
                  train_mode=False, test_speed=True)

    # Also exercise the Pallas path directly on the 4-D feat tensor and on a
    # shape whose element count is not a multiple of 128 (padding path).
    feat_copy = pallas_passthrough(feat)
    odd = jax.random.normal(k_odd, (3, 50), dtype=jnp.float32)
    odd_copy = pallas_passthrough(odd)

    jax.block_until_ready((y_train, y_test, y_speed, feat_copy, odd_copy))

    # The abstract base class must still raise, as in PyTorch.
    base = BaseDecoder()
    raised = False
    try:
        base(feat, out_enc, train_mode=True)
    except NotImplementedError:
        raised = True
    assert raised, "BaseDecoder.forward_train should raise NotImplementedError"

    # Correctness of the Pallas data path.
    assert jnp.array_equal(y_train, out_enc)
    assert jnp.array_equal(y_test, out_enc)
    assert jnp.array_equal(y_speed, out_enc)
    assert jnp.array_equal(feat_copy, feat)
    assert jnp.array_equal(odd_copy, odd)
    assert dec.train_mode is False  # last call set train_mode=False

    print("KERNEL_OK")
</pallas_src>

<mosaic_0001>
module attributes {stable_mosaic.version = 11 : i64} {
  func.func @_copy_kernel(%arg0: i32, %arg1: memref<32x128xf32, #tpu.memory_space<vmem>>, %arg2: memref<32x128xf32, #tpu.memory_space<vmem>>) attributes {dimension_semantics = [#tpu.dimension_semantics<parallel>], iteration_bounds = array<i64: 1>, scalar_prefetch = 0 : i64, scratch_operands = 0 : i64, tpu.core_type = #tpu.core_type<tc>, window_params = [{transform_indices = @transform_0, window_bounds = array<i64: 32, 128>}, {transform_indices = @transform_1, window_bounds = array<i64: 32, 128>}]} {
    %c0 = arith.constant 0 : index
    %c0_0 = arith.constant 0 : index
    %0 = vector.load %arg1[%c0, %c0_0] : memref<32x128xf32, #tpu.memory_space<vmem>>, vector<32x128xf32>
    %c0_1 = arith.constant 0 : index
    %c0_2 = arith.constant 0 : index
    %1 = vector.load %arg2[%c0_1, %c0_2] : memref<32x128xf32, #tpu.memory_space<vmem>>, vector<32x128xf32>
    tpu.vector_store %arg2[%c0_1, %c0_2], %0 {strides = array<i32>} : memref<32x128xf32, #tpu.memory_space<vmem>>, vector<32x128xf32>,
    return
  }
  func.func @transform_0(%arg0: i32) -> (i32, i32) {
    %c0_i32 = arith.constant 0 : i32
    %c0_i32_0 = arith.constant 0 : i32
    return %arg0, %c0_i32 : i32, i32
  }
  func.func @transform_1(%arg0: i32) -> (i32, i32) {
    %c0_i32 = arith.constant 0 : i32
    %c0_i32_0 = arith.constant 0 : i32
    return %arg0, %c0_i32 : i32, i32
  }
}

</mosaic_0001>

<llo_original>
// kernel: tpu_custom_call.1
$region0: #{tpu_custom_call.1}
  #allocation0 [shape = 'u32[]', space=smem, size = 0x4, offset = 0x4, fixed_abs, tag = 'smem constant byte address 0x4 - core index']
  #allocation1 [shape = 'u32[144,128]{1,0:T(1,128)}', space=vmem, size = 0x12000, scoped, tag = 'internal scratch']
  %s0 = inlined_call_operand.hbm [shape: f32[32,128], index: 0, kind: input, shape index: {}, may-alias: {0,1}]
  %s1 = inlined_call_operand.hbm [shape: f32[32,128], index: 1, kind: output, shape index: {}, may-alias: {0,1}]
  %s2 = sld [smem:[#allocation0]]
  $region18: #{tpu_custom_call.1} parent=0
    _
  %s4 = ssub.s32 1, %s2
  %s5 = scalar_select 0, %s4, %s2
  $region1: #{tpu_custom_call.1} parent=0
    #allocation2 [shape = 'u8[16384]{0}', space=vmem, size = 0x4000, scoped, tag = 'input window, operand 0, single buffered']
    #allocation3 [shape = 's32[1]{0}', space=sflag, size = 0x4, scoped, tag = 'scoped memory for tpu_custom_call.1']
    #allocation4 [shape = 's32[1]{0}', space=sflag, size = 0x4, scoped, tag = 'scoped memory for tpu_custom_call.1']
    #allocation5 [shape = 'u8[16384]{0}', space=vmem, size = 0x4000, scoped, tag = 'output window, operand 0, single buffered']
    %6 = vsyncpa [#allocation3], 0
    %7 = vsyncpa [#allocation4], 0
    // Predicated region
    $region2: #{tpu_custom_call.1} parent=1 // pred_check
      _
    $region3: #{tpu_custom_call.1} parent=1 // pred_check_branch
      %9 = sbr.rel (0) target = $region5
    $region4: #{tpu_custom_call.1} parent=1 // pred_region
      %s11 = ssub.s32 512, 512
      %12 = vsyncadd [#allocation3], %s11
      %s13 = sshll.u32 [#allocation2], 4
      %s14 = int_to_ptr.vmem [resolvable:$true] %s13
      %19 = dma.hbm_to_vmem [thread:$0]  %s0, 512, %s14, [#allocation3], 128, 128, 8
    $region5: #{tpu_custom_call.1} parent=1 // pred_fallthru
      _
    // Predicated region
    $region6: #{tpu_custom_call.1} parent=1 // pred_check
      _
    $region7: #{tpu_custom_call.1} parent=1 // pred_check_branch
      %21 = sbr.rel (0) target = $region9
    $region8: #{tpu_custom_call.1} parent=1 // pred_region
      %22 = dma.done [#allocation3], 512
    $region9: #{tpu_custom_call.1} parent=1 // pred_fallthru
      _
    %v23 = vld [vmem:[#allocation2] sm:$0xff]
    %v24 = vld [vmem:[#allocation2 + $0x8] sm:$0xff]
    %v25 = vld [vmem:[#allocation2 + $0x10] sm:$0xff]
    %v26 = vld [vmem:[#allocation2 + $0x18] sm:$0xff]
    %27 = vst [vmem:[#allocation5] sm:$0xff] %v23
    %28 = vst [vmem:[#allocation5 + $0x8] sm:$0xff] %v24
    %29 = vst [vmem:[#allocation5 + $0x10] sm:$0xff] %v25
    %30 = vst [vmem:[#allocation5 + $0x18] sm:$0xff] %v26
    // Predicated region
    $region10: #{tpu_custom_call.1} parent=1 // pred_check
      _
    $region11: #{tpu_custom_call.1} parent=1 // pred_check_branch
      %32 = sbr.rel (0) target = $region13
    $region12: #{tpu_custom_call.1} parent=1 // pred_region
      %s34 = ssub.s32 512, 512
      %35 = vsyncadd [#allocation4], %s34
      %s36 = sshll.u32 [#allocation5], 4
      %s37 = int_to_ptr.vmem [resolvable:$true] %s36
      %42 = dma.vmem_to_hbm [thread:$0]  %s37, 512, %s1, [#allocation4], 128, 128, 8
    $region13: #{tpu_custom_call.1} parent=1 // pred_fallthru
      _
    // Predicated region
    $region14: #{tpu_custom_call.1} parent=1 // pred_check
      _
    $region15: #{tpu_custom_call.1} parent=1 // pred_check_branch
      %44 = sbr.rel (0) target = $region17
    $region16: #{tpu_custom_call.1} parent=1 // pred_region
      %45 = dma.done [#allocation4], 512
    $region17: #{tpu_custom_call.1} parent=1 // pred_fallthru
      _
    %46 = vsyncpa [#allocation3], 1
    %47 = vsyncpa [#allocation4], 1

</llo_original>
